<compile_context>
chip_gen: v6e
topology: v6e:2x2x1
jax: 0.10.0
libtpu: 0.0.40
codegen_flags: <defaults>
</compile_context>

<pallas_src>
import functools

import jax
import jax.numpy as jnp
from jax import lax
from jax.experimental import pallas as pl
from jax.experimental.pallas import tpu as pltpu


_TARGET_TILE_BYTES = 4 << 20   # per input per pipeline buffer
_MAX_TILE_D = 131072           # cap on lane-tile width (columns)


def _round_up(x: int, m: int) -> int:
    return ((x + m - 1) // m) * m


def _cdiv(a: int, b: int) -> int:
    return -(-a // b)


def _num_tensorcores() -> int:
    """TensorCores addressable by one pallas_call via a 'parallel' grid axis."""
    try:
        dev = jax.devices()[0]
        if dev.platform != "tpu":
            return 1
        kind = dev.device_kind.lower()
    except Exception:
        return 1
    # v5e / v6e (and per-core v2/v3 devices) expose a single TensorCore.
    if "lite" in kind or "v5e" in kind or "v6" in kind or "v2" in kind or "v3" in kind:
        return 1
    # v4 / v5p megacore and v7x: two TensorCores share the grid.
    return 2


def _gram_kernel(x1_ref, x2_ref, s_ref, xc_ref, *, d, tiles_per_core):
    """Accumulate a fused (2B, 2B) Gram matrix over D tiles.

    grid = (core, d_tile).  s_ref is a (2B, 2B) f32 block resident across the
    (last, 'arbitrary') d_tile axis: one partial Gram per core.
    """
    c = pl.program_id(0)
    k = pl.program_id(1)

    @pl.when(k == 0)
    def _():
        s_ref[...] = jnp.zeros_like(s_ref)

    b = x1_ref.shape[0]
    tile_d = x1_ref.shape[1]

    # Fuse the two Gram products: a single (2B, TILE_D) operand means one MXU
    # weight-push series per K-chunk instead of two (M = N = B is weight-latch
    # bound, not FLOP bound).  The VMEM concat is a few hundred cycles and
    # hides under the matmul issue.
    xc_ref[pl.ds(0, b), :] = x1_ref[...]
    xc_ref[pl.ds(b, b), :] = x2_ref[...]

    # Mask columns past the true feature dim D.  Only the last (partial) tile
    # pays this — it replaces the old jnp.pad HBM round-trip.
    start = (c * tiles_per_core + k) * tile_d

    @pl.when(start + tile_d > d)
    def _():
        col = start + lax.broadcasted_iota(jnp.int32, xc_ref.shape, 1)
        xc = xc_ref[...]
        xc_ref[...] = jnp.where(col < d, xc, jnp.zeros_like(xc))

    xc = xc_ref[...]
    # X @ X^T contracting the wide lane axis (fully utilized MXU K).  No
    # transpose is materialized (same pattern as q @ k^T in flash attention);
    # products accumulate in f32 via preferred_element_type.
    s_ref[...] += lax.dot_general(
        xc, xc, (((1,), (1,)), ((), ())), preferred_element_type=jnp.float32)


def _finalize_kernel(sp_ref, out_ref, *, b, inv_d2):
    """Combine per-core partial Grams, normalize (B x B work only) -> scalar."""
    s = jnp.sum(sp_ref[...], axis=0)            # (2B, 2B) f32
    s1 = s[:b, :b]                              # X1 @ X1^T
    s2 = s[b:, b:]                              # X2 @ X2^T

    row = lax.broadcasted_iota(jnp.int32, (b, b), 0)
    col = lax.broadcasted_iota(jnp.int32, (b, b), 1)
    eye = (row == col).astype(s.dtype)

    # diag(S) is the per-row sum of squares; extract it both as a column and
    # as a row (S is symmetric) so no in-kernel transpose is needed.
    d1c = jnp.sum(s1 * eye, axis=1, keepdims=True)   # (B, 1)
    d1r = jnp.sum(s1 * eye, axis=0, keepdims=True)   # (1, B)
    d2c = jnp.sum(s2 * eye, axis=1, keepdims=True)
    d2r = jnp.sum(s2 * eye, axis=0, keepdims=True)

    den1 = (jnp.sqrt(d1c) + 1e-6) * (jnp.sqrt(d1r) + 1e-6)   # outer product
    den2 = (jnp.sqrt(d2c) + 1e-6) * (jnp.sqrt(d2r) + 1e-6)
    g1 = s1 / den1
    g2 = s2 / den2

    # mean((x1n^T @ x2n)^2) == sum(G1 * G2) / D^2
    out_ref[0, 0] = jnp.sum(g1 * g2) * inv_d2


def diff_loss(input1: jax.Array, input2: jax.Array) -> jax.Array:
    """Pallas implementation of DSN DiffLoss forward. Returns an f32 scalar."""
    # TODO(synk): forward only — no custom VJP (note torch detaches the norm,
    # so the correct backward is not the naive gradient of this expression).
    b = input1.shape[0]
    x1 = input1.reshape(b, -1)
    x2 = input2.reshape(b, -1)
    assert x1.shape == x2.shape, "DiffLoss requires matching flattened shapes"
    dt = jnp.promote_types(x1.dtype, x2.dtype)
    x1 = x1.astype(dt)
    x2 = x2.astype(dt)
    d = x1.shape[1]

    ncores = _num_tensorcores()

    # ---- tiling: choose the tile COUNT first, then the width --------------
    itemsize = jnp.dtype(dt).itemsize
    d128 = _round_up(d, 128)                       # lane-aligned logical width
    cap_d = max(128, min(_MAX_TILE_D,
                         (_TARGET_TILE_BYTES // max(1, b * itemsize)) // 128 * 128))
    min_tiles = _cdiv(d128, cap_d)
    if min_tiles < ncores:
        ncores = 1                                  # too little work to split
    num_tiles = _round_up(max(min_tiles, ncores), ncores)
    tile_d = _round_up(_cdiv(d128, num_tiles), 128)
    if ncores > 1 and (num_tiles - 1) * tile_d >= d:
        # Rounding the tile count up to the core count produced an empty tail
        # tile; fall back to the single-core reduction grid (rare shapes).
        ncores = 1
        num_tiles = max(min_tiles, 1)
        tile_d = _round_up(_cdiv(d128, num_tiles), 128)
    tiles_per_core = num_tiles // ncores

    # Double-buffered x1/x2 tiles + fused (2B, TILE_D) concat scratch + slack.
    tile_bytes = b * tile_d * itemsize
    vmem_limit = int(min(48 << 20, 2 * 2 * tile_bytes + 2 * tile_bytes + (16 << 20)))

    in_spec = pl.BlockSpec((b, tile_d), lambda c, k: (0, c * tiles_per_core + k))
    out_spec = pl.BlockSpec((None, 2 * b, 2 * b), lambda c, k: (c, 0, 0))

    s_partial = pl.pallas_call(
        functools.partial(_gram_kernel, d=d, tiles_per_core=tiles_per_core),
        grid=(ncores, tiles_per_core),
        in_specs=[in_spec, in_spec],
        out_specs=out_spec,
        out_shape=jax.ShapeDtypeStruct((ncores, 2 * b, 2 * b), jnp.float32),
        scratch_shapes=[pltpu.VMEM((2 * b, tile_d), dt)],
        compiler_params=pltpu.CompilerParams(
            dimension_semantics=("parallel", "arbitrary"),
            vmem_limit_bytes=vmem_limit),
    )(x1, x2)

    # Tiny finalize kernel: only (2B)^2 elements of work, scalar out in SMEM.
    # The mean divisor uses the TRUE (unpadded) D so it matches torch exactly.
    out = pl.pallas_call(
        functools.partial(_finalize_kernel, b=b, inv_d2=float(1.0 / (d * d))),
        out_shape=jax.ShapeDtypeStruct((1, 1), jnp.float32),
        in_specs=[pl.BlockSpec(memory_space=pltpu.VMEM)],
        out_specs=pl.BlockSpec(memory_space=pltpu.SMEM),
    )(s_partial)
    return out[0, 0]


def _diff_loss_ref(input1: jax.Array, input2: jax.Array) -> jax.Array:
    """Pure-JAX reference mirroring the PyTorch code (full-precision matmul)."""
    b = input1.shape[0]
    x1 = input1.reshape(b, -1).astype(jnp.float32)
    x2 = input2.reshape(b, -1).astype(jnp.float32)
    n1 = jnp.linalg.norm(x1, axis=1, keepdims=True)
    n2 = jnp.linalg.norm(x2, axis=1, keepdims=True)
    x1n = x1 / (n1 + 1e-6)
    x2n = x2 / (n2 + 1e-6)
    c = jnp.matmul(x1n.T, x2n, precision=jax.lax.Precision.HIGHEST)
    return jnp.mean(jnp.square(c))


if __name__ == "__main__":
    # DSN DiffLoss operates on flat (batch, hidden) representations.
    # D=100 deliberately not a multiple of 128 to exercise the in-kernel
    # tail-column mask (no HBM padding copy any more).
    key = jax.random.PRNGKey(0)
    k1, k2 = jax.random.split(key)
    B, D = 8, 100
    # Round values through bf16 so MXU product terms are exact regardless of
    # the backend's f32-matmul pass count (keeps the comparison tight).
    input1 = jax.random.normal(k1, (B, D), jnp.float32).astype(jnp.bfloat16).astype(jnp.float32)
    input2 = jax.random.normal(k2, (B, D), jnp.float32).astype(jnp.bfloat16).astype(jnp.float32)

    loss = jax.block_until_ready(diff_loss(input1, input2))
    ref = jax.block_until_ready(_diff_loss_ref(input1, input2))

    assert jnp.allclose(loss, ref, rtol=1e-4, atol=1e-8), (loss, ref)
    print("KERNEL_OK")
</pallas_src>

<mosaic_0001>
module attributes {stable_mosaic.version = 11 : i64} {
  func.func @_gram_kernel(%arg0: i32, %arg1: i32, %arg2: memref<8x128xf32, #tpu.memory_space<vmem>>, %arg3: memref<8x128xf32, #tpu.memory_space<vmem>>, %arg4: memref<1x16x16xf32, #tpu.memory_space<vmem>>, %arg5: memref<16x128xf32, #tpu.memory_space<vmem>>) attributes {dimension_semantics = [#tpu.dimension_semantics<parallel>, #tpu.dimension_semantics<arbitrary>], iteration_bounds = array<i64: 1, 1>, scalar_prefetch = 0 : i64, scratch_operands = 1 : i64, tpu.core_type = #tpu.core_type<tc>, window_params = [{transform_indices = @transform_0, window_bounds = array<i64: 8, 128>}, {transform_indices = @transform_1, window_bounds = array<i64: 8, 128>}, {transform_indices = @transform_2, window_bounds = array<i64: 1, 16, 16>}]} {
    %c0_i32 = arith.constant 0 : i32
    %0 = arith.cmpi eq, %arg1, %c0_i32 : i32
    %1 = arith.extui %0 : i1 to i32
    %c0_i32_0 = arith.constant 0 : i32
    %2 = arith.cmpi ne, %1, %c0_i32_0 : i32
    scf.if %2 {
      %cst_17 = arith.constant 0.000000e+00 : f32
      %22 = vector.broadcast %cst_17 : f32 to vector<16x16xf32>
      %c0_18 = arith.constant 0 : index
      %c0_19 = arith.constant 0 : index
      %c0_20 = arith.constant 0 : index
      %23 = vector.load %arg4[%c0_18, %c0_19, %c0_20] : memref<1x16x16xf32, #tpu.memory_space<vmem>>, vector<1x16x16xf32>
      %24 = vector.shape_cast %23 : vector<1x16x16xf32> to vector<16x16xf32>
      %25 = vector.shape_cast %22 : vector<16x16xf32> to vector<1x16x16xf32>
      tpu.vector_store %arg4[%c0_18, %c0_19, %c0_20], %25 {strides = array<i32>} : memref<1x16x16xf32, #tpu.memory_space<vmem>>, vector<1x16x16xf32>,
    } else {
    }
    %c0 = arith.constant 0 : index
    %c0_1 = arith.constant 0 : index
    %3 = vector.load %arg2[%c0, %c0_1] : memref<8x128xf32, #tpu.memory_space<vmem>>, vector<8x128xf32>
    %c0_2 = arith.constant 0 : index
    %c0_3 = arith.constant 0 : index
    %4 = vector.load %arg5[%c0_2, %c0_3] : memref<16x128xf32, #tpu.memory_space<vmem>>, vector<8x128xf32>
    tpu.vector_store %arg5[%c0_2, %c0_3], %3 {strides = array<i32>} : memref<16x128xf32, #tpu.memory_space<vmem>>, vector<8x128xf32>,
    %c0_4 = arith.constant 0 : index
    %c0_5 = arith.constant 0 : index
    %5 = vector.load %arg3[%c0_4, %c0_5] : memref<8x128xf32, #tpu.memory_space<vmem>>, vector<8x128xf32>
    %c8 = arith.constant 8 : index
    %c0_6 = arith.constant 0 : index
    %6 = vector.load %arg5[%c8, %c0_6] : memref<16x128xf32, #tpu.memory_space<vmem>>, vector<8x128xf32>
    tpu.vector_store %arg5[%c8, %c0_6], %5 {strides = array<i32>} : memref<16x128xf32, #tpu.memory_space<vmem>>, vector<8x128xf32>,
    %c1_i32 = arith.constant 1 : i32
    %7 = arith.muli %arg0, %c1_i32 : i32
    %8 = arith.addi %7, %arg1 : i32
    %c128_i32 = arith.constant 128 : i32
    %9 = arith.muli %8, %c128_i32 : i32
    %c128_i32_7 = arith.constant 128 : i32
    %10 = arith.addi %9, %c128_i32_7 : i32
    %c100_i32 = arith.constant 100 : i32
    %11 = arith.cmpi sgt, %10, %c100_i32 : i32
    %12 = arith.extui %11 : i1 to i32
    %c0_i32_8 = arith.constant 0 : i32
    %13 = arith.cmpi ne, %12, %c0_i32_8 : i32
    scf.if %13 {
      %22 = tpu.iota {dimensions = array<i32: 1>} : vector<16x128xi32>
      %23 = vector.broadcast %9 : i32 to vector<16x128xi32>
      %24 = arith.addi %23, %22 : vector<16x128xi32>
      %c0_17 = arith.constant 0 : index
      %c0_18 = arith.constant 0 : index
      %25 = vector.load %arg5[%c0_17, %c0_18] : memref<16x128xf32, #tpu.memory_space<vmem>>, vector<16x128xf32>
      %c100_i32_19 = arith.constant 100 : i32
      %26 = vector.broadcast %c100_i32_19 : i32 to vector<16x128xi32>
      %27 = arith.cmpi slt, %24, %26 : vector<16x128xi32>
      %cst_20 = arith.constant 0.000000e+00 : f32
      %28 = vector.broadcast %cst_20 : f32 to vector<16x128xf32>
      %29 = arith.select %27, %25, %28 : vector<16x128xi1>, vector<16x128xf32>
      %c0_21 = arith.constant 0 : index
      %c0_22 = arith.constant 0 : index
      %30 = vector.load %arg5[%c0_21, %c0_22] : memref<16x128xf32, #tpu.memory_space<vmem>>, vector<16x128xf32>
      tpu.vector_store %arg5[%c0_21, %c0_22], %29 {strides = array<i32>} : memref<16x128xf32, #tpu.memory_space<vmem>>, vector<16x128xf32>,
    } else {
    }
    %c0_9 = arith.constant 0 : index
    %c0_10 = arith.constant 0 : index
    %14 = vector.load %arg5[%c0_9, %c0_10] : memref<16x128xf32, #tpu.memory_space<vmem>>, vector<16x128xf32>
    %c0_11 = arith.constant 0 : index
    %c0_12 = arith.constant 0 : index
    %c0_13 = arith.constant 0 : index
    %15 = vector.load %arg4[%c0_11, %c0_12, %c0_13] : memref<1x16x16xf32, #tpu.memory_space<vmem>>, vector<1x16x16xf32>
    %16 = vector.shape_cast %15 : vector<1x16x16xf32> to vector<16x16xf32>
    %cst = arith.constant dense<0.000000e+00> : vector<16x16xf32>
    %17 = tpu.matmul %14, %14, %cst {dimension_numbers = #tpu.dot_dimension_numbers<[1], [1], [0], [0], [0, 0, 1, 0], [], []>} : vector<16x128xf32>, vector<16x128xf32>, vector<16x16xf32> -> vector<16x16xf32>
    %18 = arith.addf %16, %17 : vector<16x16xf32>
    %c0_14 = arith.constant 0 : index
    %c0_15 = arith.constant 0 : index
    %c0_16 = arith.constant 0 : index
    %19 = vector.load %arg4[%c0_14, %c0_15, %c0_16] : memref<1x16x16xf32, #tpu.memory_space<vmem>>, vector<1x16x16xf32>
    %20 = vector.shape_cast %19 : vector<1x16x16xf32> to vector<16x16xf32>
    %21 = vector.shape_cast %18 : vector<16x16xf32> to vector<1x16x16xf32>
    tpu.vector_store %arg4[%c0_14, %c0_15, %c0_16], %21 {strides = array<i32>} : memref<1x16x16xf32, #tpu.memory_space<vmem>>, vector<1x16x16xf32>,
    return
  }
  func.func @transform_0(%arg0: i32, %arg1: i32) -> (i32, i32) {
    %c1_i32 = arith.constant 1 : i32
    %0 = arith.muli %arg0, %c1_i32 : i32
    %1 = arith.addi %0, %arg1 : i32
    %c0_i32 = arith.constant 0 : i32
    %c0_i32_0 = arith.constant 0 : i32
    return %c0_i32, %1 : i32, i32
  }
  func.func @transform_1(%arg0: i32, %arg1: i32) -> (i32, i32) {
    %c1_i32 = arith.constant 1 : i32
    %0 = arith.muli %arg0, %c1_i32 : i32
    %1 = arith.addi %0, %arg1 : i32
    %c0_i32 = arith.constant 0 : i32
    %c0_i32_0 = arith.constant 0 : i32
    return %c0_i32, %1 : i32, i32
  }
  func.func @transform_2(%arg0: i32, %arg1: i32) -> (i32, i32, i32) {
    %c0_i32 = arith.constant 0 : i32
    %c0_i32_0 = arith.constant 0 : i32
    %c0_i32_1 = arith.constant 0 : i32
    return %arg0, %c0_i32, %c0_i32_0 : i32, i32, i32
  }
}

</mosaic_0001>

<llo_original>
// kernel: tpu_custom_call.1
$region0: #{tpu_custom_call.1}
  #allocation0 [shape = 'u32[]', space=smem, size = 0x4, offset = 0x4, fixed_abs, tag = 'smem constant byte address 0x4 - core index']
  #allocation1 [shape = 'u32[144,128]{1,0:T(1,128)}', space=vmem, size = 0x12000, scoped, tag = 'internal scratch']
  #allocation2 [shape = 'f32[16,128]{1,0:T(8,128)}', space=vmem, size = 0x2000, scoped, tag = 'scratch operand']
  %s0 = inlined_call_operand.hbm [shape: f32[8,100], index: 0, kind: input, shape index: {}]
  %s1 = inlined_call_operand.hbm [shape: f32[8,100], index: 1, kind: input, shape index: {}]
  %s2 = inlined_call_operand.hbm [shape: f32[1,16,16], index: 2, kind: output, shape index: {}]
  %s3 = sld [smem:[#allocation0]]
  $region34: #{tpu_custom_call.1} parent=0
    _
  %s5 = ssub.s32 1, %s3
  %s6 = scalar_select 0, %s5, %s3
  $region1: #{tpu_custom_call.1} parent=0
    #allocation3 [shape = 'u8[4096]{0}', space=vmem, size = 0x1000, scoped, tag = 'input window, operand 0, single buffered']
    #allocation4 [shape = 's32[1]{0}', space=sflag, size = 0x4, scoped, tag = 'scoped memory for tpu_custom_call.1']
    #allocation5 [shape = 's32[1]{0}', space=sflag, size = 0x4, scoped, tag = 'scoped memory for tpu_custom_call.1']
    #allocation6 [shape = 'u8[4096]{0}', space=vmem, size = 0x1000, scoped, tag = 'input window, operand 1, single buffered']
    #allocation7 [shape = 's32[1]{0}', space=sflag, size = 0x4, scoped, tag = 'scoped memory for tpu_custom_call.1']
    #allocation8 [shape = 'u8[8192]{0}', space=vmem, size = 0x2000, scoped, tag = 'output window, operand 0, single buffered']
    %7 = vsyncpa [#allocation4], 0
    %8 = vsyncpa [#allocation7], 0
    %9 = vsyncpa [#allocation5], 0
    // Predicated region
    $region2: #{tpu_custom_call.1} parent=1 // pred_check
      _
    $region3: #{tpu_custom_call.1} parent=1 // pred_check_branch
      %11 = sbr.rel (0) target = $region5
    $region4: #{tpu_custom_call.1} parent=1 // pred_region
      %s12 = sadd.s32 0, 0
      %s14 = ssub.s32 128, 128
      %15 = vsyncadd [#allocation4], %s14
      %s16 = smul.addr %s12, 128
      %s17 = scalar_lea.hbm %s0, %s16
      %s19 = sshll.u32 [#allocation3], 4
      %s20 = int_to_ptr.vmem [resolvable:$true] %s19
      %22 = dma.hbm_to_vmem [thread:$0]  %s17, 128, %s20, [#allocation4]
    $region5: #{tpu_custom_call.1} parent=1 // pred_fallthru
      _
    // Predicated region
    $region6: #{tpu_custom_call.1} parent=1 // pred_check
      _
    $region7: #{tpu_custom_call.1} parent=1 // pred_check_branch
      %24 = sbr.rel (0) target = $region9
    $region8: #{tpu_custom_call.1} parent=1 // pred_region
      %s25 = sadd.s32 0, 0
      %s27 = ssub.s32 128, 128
      %28 = vsyncadd [#allocation7], %s27
      %s29 = smul.addr %s25, 128
      %s30 = scalar_lea.hbm %s1, %s29
      %s32 = sshll.u32 [#allocation6], 4
      %s33 = int_to_ptr.vmem [resolvable:$true] %s32
      %35 = dma.hbm_to_vmem [thread:$0]  %s30, 128, %s33, [#allocation7]
    $region9: #{tpu_custom_call.1} parent=1 // pred_fallthru
      _
    // Predicated region
    $region10: #{tpu_custom_call.1} parent=1 // pred_check
      _
    $region11: #{tpu_custom_call.1} parent=1 // pred_check_branch
      %37 = sbr.rel (0) target = $region13
    $region12: #{tpu_custom_call.1} parent=1 // pred_region
      %38 = dma.done [#allocation4], 128
    $region13: #{tpu_custom_call.1} parent=1 // pred_fallthru
      _
    // Predicated region
    $region14: #{tpu_custom_call.1} parent=1 // pred_check
      _
    $region15: #{tpu_custom_call.1} parent=1 // pred_check_branch
      %40 = sbr.rel (0) target = $region17
    $region16: #{tpu_custom_call.1} parent=1 // pred_region
      %41 = dma.done [#allocation7], 128
    $region17: #{tpu_custom_call.1} parent=1 // pred_fallthru
      _
    %s42 = sadd.s32 0, 0
    %s43 = sadd.s32 0, 0
    %p44 = scmp.eq.s32.totalorder 0, 0
    // Predicated region
    $region18: #{tpu_custom_call.1} parent=1 // pred_check
      %p45 = pneg %p44
    $region19: #{tpu_custom_call.1} parent=1 // pred_check_branch
      %47 = sbr.rel (%p45) target = $region21
    $region20: #{tpu_custom_call.1} parent=1 // pred_region
      %vm48 = vcmask 130048
      %49 = vst.msk [vmem:[#allocation8] sm:$0xff] %vm48, 0.0
      %50 = vst.msk [vmem:[#allocation8 + $0x8] sm:$0xff] %vm48, 0.0
    $region21: #{tpu_custom_call.1} parent=1 // pred_fallthru
      _
    %v51 = vld [vmem:[#allocation3] sm:$0xff]
    %52 = vst [vmem:[#allocation2] sm:$0xff] %v51
    %v53 = vld [vmem:[#allocation6] sm:$0xff]
    %54 = vst [vmem:[#allocation2 + $0x8] sm:$0xff] %v53
    %s55 = sadd.s32 0, 0
    %s56 = smul.u32 %s55, 128
    %s57 = sadd.s32 %s56, 128
    %p58 = scmp.gt.s32.totalorder %s57, 100
    // Predicated region
    $region22: #{tpu_custom_call.1} parent=1 // pred_check
      %p59 = pneg %p58
    $region23: #{tpu_custom_call.1} parent=1 // pred_check_branch
      %61 = sbr.rel (%p59) target = $region25
    $region24: #{tpu_custom_call.1} parent=1 // pred_region
      %v62 = vlaneseq
      %v63 = vand.u32 %v62, 127
      %v64 = vstv %s56
      %v65 = vadd.s32 %v64, %v63
      %v66 = vld [vmem:[#allocation2] sm:$0xff]
      %v67 = vld [vmem:[#allocation2 + $0x8] sm:$0xff]
      %vm68 = vcmp.lt.s32.totalorder %v65, 100
      %v69 = vsel %vm68, %v66, 0.0
      %v70 = vsel %vm68, %v67, 0.0
      %71 = vst [vmem:[#allocation2] sm:$0xff] %v69
      %72 = vst [vmem:[#allocation2 + $0x8] sm:$0xff] %v70
    $region25: #{tpu_custom_call.1} parent=1 // pred_fallthru
      _
    %v73 = vld [vmem:[#allocation2] sm:$0xff]
    %v74 = vld [vmem:[#allocation2 + $0x8] sm:$0xff]
    %v75 = vld [vmem:[#allocation8] sm:$0xff]
    %v76 = vld [vmem:[#allocation8 + $0x8] sm:$0xff]
    %77 = vmatprep.subr.mxu0 0.0
    %78 = vmatpush1.xpose.msra.mxu0 0.0
    %79 = vmatprep.subr.mxu0 0.0
    %80 = vmatpush1.xpose.msra.mxu0 0.0
    %81 = vmatprep.subr.mxu0 0.0
    %82 = vmatpush1.xpose.msra.mxu0 0.0
    %83 = vmatprep.subr.mxu0 0.0
    %84 = vmatpush1.xpose.msra.mxu0 0.0
    %85 = vmatprep.subr.mxu0 0.0
    %86 = vmatpush1.xpose.msra.mxu0 0.0
    %87 = vmatprep.subr.mxu0 0.0
    %88 = vmatpush1.xpose.msra.mxu0 0.0
    %89 = vmatprep.subr.mxu0 0.0
    %90 = vmatpush1.xpose.msra.mxu0 0.0
    %91 = vmatprep.subr.mxu0 0.0
    %92 = vmatpush1.xpose.msra.mxu0 0.0
    %93 = vmatprep.subr.mxu0 0.0
    %94 = vmatpush1.xpose.msra.mxu0 0.0
    %95 = vmatprep.subr.mxu0 0.0
    %96 = vmatpush1.xpose.msra.mxu0 0.0
    %97 = vmatprep.subr.mxu0 0.0
    %98 = vmatpush1.xpose.msra.mxu0 0.0
    %99 = vmatprep.subr.mxu0 0.0
    %100 = vmatpush1.xpose.msra.mxu0 0.0
    %101 = vmatprep.subr.mxu0 0.0
    %102 = vmatpush1.xpose.msra.mxu0 0.0
    %103 = vmatprep.subr.mxu0 0.0
    %104 = vmatpush1.xpose.msra.mxu0 0.0
    %105 = vmatprep.subr.mxu0 0.0
    %106 = vmatpush1.xpose.msra.mxu0 %v74
    %107 = vmatprep.subr.mxu0 0.0
    %108 = vmatpush1.xpose.msra.mxu0 %v73
    %109 = vmatprep.subr.mxu0 0.0
    %110 = vmatpush2.xpose.msra.mxu0 0.0
    %111 = vmatprep.subr.mxu0 0.0
    %112 = vmatpush2.xpose.msra.mxu0 0.0
    %113 = vmatprep.subr.mxu0 0.0
    %114 = vmatpush2.xpose.msra.mxu0 0.0
    %115 = vmatprep.subr.mxu0 0.0
    %116 = vmatpush2.xpose.msra.mxu0 0.0
    %117 = vmatprep.subr.mxu0 0.0
    %118 = vmatpush2.xpose.msra.mxu0 0.0
    %119 = vmatprep.subr.mxu0 0.0
    %120 = vmatpush2.xpose.msra.mxu0 0.0
    %121 = vmatprep.subr.mxu0 0.0
    %122 = vmatpush2.xpose.msra.mxu0 0.0
    %123 = vmatprep.subr.mxu0 0.0
    %124 = vmatpush2.xpose.msra.mxu0 0.0
    %125 = vmatprep.subr.mxu0 0.0
    %126 = vmatpush2.xpose.msra.mxu0 0.0
    %127 = vmatprep.subr.mxu0 0.0
    %128 = vmatpush2.xpose.msra.mxu0 0.0
    %129 = vmatprep.subr.mxu0 0.0
    %130 = vmatpush2.xpose.msra.mxu0 0.0
    %131 = vmatprep.subr.mxu0 0.0
    %132 = vmatpush2.xpose.msra.mxu0 0.0
    %133 = vmatprep.subr.mxu0 0.0
    %134 = vmatpush2.xpose.msra.mxu0 0.0
    %135 = vmatprep.subr.mxu0 0.0
    %136 = vmatpush2.xpose.msra.mxu0 0.0
    %137 = vmatprep.subr.mxu0 0.0
    %138 = vmatpush2.xpose.msra.mxu0 0.0
    %139 = vmatprep.subr.mxu0 0.0
    %140 = vmatpush2.xpose.msra.mxu0 0.0
    %141 = vmatprep.mubr.f32.mxu0 0.0
    %142 = vmatmul.mubr.f32.gmra.mxu0 %v73
    %v143 = vpop.f32.mrf.mxu0
    %v144 = vadd.f32 0.0, %v143
    %v145 = vpop.f32.mrf.mxu0
    %146 = vmatprep.mubr.f32.mxu0 0.0
    %147 = vmatmul.mubr.f32.gmra.mxu0 %v74
    %v148 = vpop.f32.mrf.mxu0
    %v149 = vadd.f32 0.0, %v148
    %v150 = vpop.f32.mrf.mxu0
    %151 = vdwg.mxu0
    %v152 = vadd.f32 %v75, %v144
    %v153 = vadd.f32 %v76, %v149
    %vm154 = vcmask 130048
    %155 = vst.msk [vmem:[#allocation8] sm:$0xff] %vm154, %v152
    %156 = vst.msk [vmem:[#allocation8 + $0x8] sm:$0xff] %vm154, %v153
    // Predicated region
    $region26: #{tpu_custom_call.1} parent=1 // pred_check
      _
    $region27: #{tpu_custom_call.1} parent=1 // pred_check_branch
      %158 = sbr.rel (0) target = $region29
    $region28: #{tpu_custom_call.1} parent=1 // pred_region
      %s160 = ssub.s32 256, 256
      %161 = vsyncadd [#allocation5], %s160
      %s162 = sshll.u32 [#allocation8], 4
      %s163 = int_to_ptr.vmem [resolvable:$true] %s162
      %168 = dma.vmem_to_hbm [thread:$0]  %s163, 256, %s2, [#allocation5], 128, 128, 8
    $region29: #{tpu_custom_call.1} parent=1 // pred_fallthru
      _
    // Predicated region
    $region30: #{tpu_custom_call.1} parent=1 // pred_check
      _
    $region31: #{tpu_custom_call.1} parent=1 // pred_check_branch
      %170 = sbr.rel (0) target = $region33
    $region32: #{tpu_custom_call.1} parent=1 // pred_region
      %171 = dma.done [#allocation5], 256
    $region33: #{tpu_custom_call.1} parent=1 // pred_fallthru
      _
    %172 = vsyncpa [#allocation4], 1
    %173 = vsyncpa [#allocation7], 1
    %174 = vsyncpa [#allocation5], 1

</llo_original>
